<compile_context>
chip_gen: v6e
topology: v6e:2x2x1
jax: 0.10.0
libtpu: 0.0.40
codegen_flags: <defaults>
</compile_context>

<pallas_src>
import math

import jax
import jax.numpy as jnp
from jax.experimental import pallas as pl
from jax.experimental.pallas import tpu as pltpu


def rte_kernel_dense(t_ref, wide_ref, x_ref, o_ref):
    """Lane-dense variant: G = 128 // n_hid original rows folded per 128-lane row.

    t_ref:    (tile_flat, G) int32   -- G time indices per flattened row
    wide_ref: (G, Lp, 128)   float32 -- block-diagonal fused table:
                                        wide[g, l, g*n_hid:(g+1)*n_hid] = table[l]
    x_ref:    (tile_flat, 128) float32
    o_ref:    (tile_flat, 128) float32
    """
    t_blk = t_ref[...]                                        # (tile_flat, G)
    tile_flat, G = t_blk.shape
    Lp = wide_ref.shape[1]
    pos = jax.lax.broadcasted_iota(jnp.int32, (tile_flat, Lp), 1)
    e = jnp.zeros((tile_flat, 128), jnp.float32)
    for g in range(G):                                        # G is 2/4/8, unrolled
        onehot = (pos == t_blk[:, g:g + 1]).astype(jnp.float32)   # (tile_flat, Lp)
        e = e + jnp.dot(onehot, wide_ref[g],
                        preferred_element_type=jnp.float32)       # (tile_flat, 128)
    o_ref[...] = x_ref[...] + e


def rte_kernel_plain(t_ref, table_ref, x_ref, o_ref):
    """Fallback: one row per (tile_n, n_hid) block.  Used when n_hid % 128 == 0
    (already lane dense) or when the lane-fold does not divide evenly."""
    t = t_ref[...]                                            # (tile_n, 1)
    tile_n = t.shape[0]
    Lp = table_ref.shape[0]
    pos = jax.lax.broadcasted_iota(jnp.int32, (tile_n, Lp), 1)
    onehot = (pos == t).astype(jnp.float32)                   # (tile_n, Lp)
    e = jnp.dot(onehot, table_ref[...], preferred_element_type=jnp.float32)
    o_ref[...] = x_ref[...] + e


def rel_temporal_encoding(x, t, emb_table, w, b, *, tile_n=256):
    """out = x + (emb_table[t] @ w.T + b).   x: (N, n_hid) f32, t: (N,) int."""
    N, n_hid = x.shape
    max_len = emb_table.shape[0]

    # ---- host-side fusion: Linear folded into the table (done once) ----------
    table = (jnp.dot(emb_table, w.T, precision=jax.lax.Precision.HIGHEST)
             + b[None, :]).astype(jnp.float32)                # (max_len, n_hid)

    # Pad the contraction dim (table rows) to a multiple of 256 -> clean MXU K.
    Lp = ((max_len + 255) // 256) * 256
    if Lp != max_len:
        table = jnp.pad(table, ((0, Lp - max_len), (0, 0)))

    # ---- pad N up to a tile multiple (remainder handled by zero padding) -----
    n_tiles = pl.cdiv(N, tile_n)
    N_pad = n_tiles * tile_n
    if N_pad != N:
        x = jnp.pad(x, ((0, N_pad - N), (0, 0)))
        t = jnp.pad(t, ((0, N_pad - N),))
    t = t.astype(jnp.int32)

    # Actual VMEM use is ~1-2 MiB at these sizes; 32 MiB is a safe explicit
    # budget on v5e / v6e / v7x (re-derive if n_hid scales to ~1024).
    params = pltpu.CompilerParams(
        dimension_semantics=("parallel",),
        vmem_limit_bytes=32 * 1024 * 1024,
    )

    # ---- lane-dense path: fold G = 128 // n_hid rows into each 128-lane row --
    G = 128 // n_hid if (n_hid < 128 and 128 % n_hid == 0) else 0
    if 2 <= G <= 8 and tile_n % (8 * G) == 0:
        tile_flat = tile_n // G
        x_flat = x.reshape(N_pad // G, 128)          # lane-dense view of x
        t_resh = t.reshape(N_pad // G, G)
        wide = jnp.zeros((G, Lp, 128), jnp.float32)  # block-diagonal fused table
        for g in range(G):
            wide = wide.at[g, :, g * n_hid:(g + 1) * n_hid].set(table)

        out_flat = pl.pallas_call(
            rte_kernel_dense,
            out_shape=jax.ShapeDtypeStruct(x_flat.shape, jnp.float32),
            grid=(n_tiles,),
            in_specs=[
                pl.BlockSpec((tile_flat, G), lambda i: (i, 0)),     # t
                pl.BlockSpec((G, Lp, 128), lambda i: (0, 0, 0)),    # wide table
                pl.BlockSpec((tile_flat, 128), lambda i: (i, 0)),   # x (dense)
            ],
            out_specs=pl.BlockSpec((tile_flat, 128), lambda i: (i, 0)),
            compiler_params=params,
        )(t_resh, wide, x_flat)
        return out_flat.reshape(N_pad, n_hid)[:N]

    # ---- plain path (n_hid % 128 == 0 is already lane dense) -----------------
    t2 = t.reshape(N_pad, 1)
    out = pl.pallas_call(
        rte_kernel_plain,
        out_shape=jax.ShapeDtypeStruct((N_pad, n_hid), jnp.float32),
        grid=(n_tiles,),
        in_specs=[
            pl.BlockSpec((tile_n, 1), lambda i: (i, 0)),            # t
            pl.BlockSpec((Lp, n_hid), lambda i: (0, 0)),            # fused table
            pl.BlockSpec((tile_n, n_hid), lambda i: (i, 0)),        # x
        ],
        out_specs=pl.BlockSpec((tile_n, n_hid), lambda i: (i, 0)),
        compiler_params=params,
    )(t2, table, x)
    return out[:N]


def make_params(n_hid, max_len, key):
    """Deterministically build the sinusoid table and Linear params
    (matches the PyTorch __init__)."""
    position = jnp.arange(0.0, max_len, dtype=jnp.float32)[:, None]      # (L, 1)
    div_term = jnp.exp(jnp.arange(0, n_hid, 2, dtype=jnp.float32)
                       * (-(math.log(10000.0) / n_hid)))                 # (n_hid/2,)
    emb = jnp.zeros((max_len, n_hid), jnp.float32)
    emb = emb.at[:, 0::2].set(jnp.sin(position * div_term) / math.sqrt(n_hid))
    emb = emb.at[:, 1::2].set(jnp.cos(position * div_term) / math.sqrt(n_hid))

    kw, kb = jax.random.split(key)
    bound = 1.0 / math.sqrt(n_hid)
    w = jax.random.uniform(kw, (n_hid, n_hid), jnp.float32, -bound, bound)
    b = jax.random.uniform(kb, (n_hid,), jnp.float32, -bound, bound)
    return emb, w, b


if __name__ == "__main__":
    n_hid = 32
    max_len = 240
    N = 1000          # deliberately NOT a multiple of tile_n -> exercises padding
    tile_n = 256      # -> 4 grid steps: both v7x TensorCores get work

    key = jax.random.PRNGKey(0)
    k_x, k_t, k_p = jax.random.split(key, 3)

    x = jax.random.normal(k_x, (N, n_hid), jnp.float32)
    t = jax.random.randint(k_t, (N,), 0, max_len, jnp.int32)
    emb_table, w, b = make_params(n_hid, max_len, k_p)

    out = rel_temporal_encoding(x, t, emb_table, w, b, tile_n=tile_n)
    out = jax.block_until_ready(out)

    # Reference in plain JAX (same semantics as the PyTorch forward).
    ref = x + (jnp.dot(emb_table[t], w.T,
                       precision=jax.lax.Precision.HIGHEST) + b)
    assert out.shape == ref.shape
    assert jnp.allclose(out, ref, atol=1e-5, rtol=1e-5), "mismatch vs reference"

    print("KERNEL_OK")
</pallas_src>

<mosaic_0001>
module attributes {stable_mosaic.version = 11 : i64} {
  func.func @rte_kernel_dense(%arg0: i32, %arg1: memref<64x4xi32, #tpu.memory_space<vmem>>, %arg2: memref<4x256x128xf32, #tpu.memory_space<vmem>>, %arg3: memref<64x128xf32, #tpu.memory_space<vmem>>, %arg4: memref<64x128xf32, #tpu.memory_space<vmem>>) attributes {dimension_semantics = [#tpu.dimension_semantics<parallel>], iteration_bounds = array<i64: 4>, scalar_prefetch = 0 : i64, scratch_operands = 0 : i64, tpu.core_type = #tpu.core_type<tc>, window_params = [{transform_indices = @transform_0, window_bounds = array<i64: 64, 4>}, {pipeline_mode = #tpu.pipeline_mode<synchronous>, transform_indices = @transform_1, window_bounds = array<i64: 4, 256, 128>}, {transform_indices = @transform_2, window_bounds = array<i64: 64, 128>}, {transform_indices = @transform_3, window_bounds = array<i64: 64, 128>}]} {
    %c0 = arith.constant 0 : index
    %c0_0 = arith.constant 0 : index
    %0 = vector.load %arg1[%c0, %c0_0] : memref<64x4xi32, #tpu.memory_space<vmem>>, vector<64x4xi32>
    %1 = tpu.iota {dimensions = array<i32: 1>} : vector<64x256xi32>
    %cst = arith.constant 0.000000e+00 : f32
    %2 = vector.broadcast %cst : f32 to vector<64x128xf32>
    %3 = vector.extract_strided_slice %0 {offsets = [0, 0], sizes = [64, 1], strides = [1, 1]} : vector<64x4xi32> to vector<64x1xi32>
    %4 = vector.broadcast %3 : vector<64x1xi32> to vector<64x256xi32>
    %5 = arith.cmpi eq, %1, %4 : vector<64x256xi32>
    %6 = arith.extui %5 : vector<64x256xi1> to vector<64x256xi32>
    %7 = arith.sitofp %6 : vector<64x256xi32> to vector<64x256xf32>
    %c0_1 = arith.constant 0 : index
    %c0_2 = arith.constant 0 : index
    %c0_3 = arith.constant 0 : index
    %8 = vector.load %arg2[%c0_1, %c0_2, %c0_3] : memref<4x256x128xf32, #tpu.memory_space<vmem>>, vector<1x256x128xf32>
    %9 = vector.shape_cast %8 : vector<1x256x128xf32> to vector<256x128xf32>
    %cst_4 = arith.constant dense<0.000000e+00> : vector<64x128xf32>
    %10 = tpu.matmul %7, %9, %cst_4 {dimension_numbers = #tpu.dot_dimension_numbers<[1], [0], [0], [1], [0, 0, 1, 1], [], []>} : vector<64x256xf32>, vector<256x128xf32>, vector<64x128xf32> -> vector<64x128xf32>
    %11 = arith.addf %2, %10 : vector<64x128xf32>
    %12 = vector.extract_strided_slice %0 {offsets = [0, 1], sizes = [64, 1], strides = [1, 1]} : vector<64x4xi32> to vector<64x1xi32>
    %13 = vector.broadcast %12 : vector<64x1xi32> to vector<64x256xi32>
    %14 = arith.cmpi eq, %1, %13 : vector<64x256xi32>
    %15 = arith.extui %14 : vector<64x256xi1> to vector<64x256xi32>
    %16 = arith.sitofp %15 : vector<64x256xi32> to vector<64x256xf32>
    %c1 = arith.constant 1 : index
    %c0_5 = arith.constant 0 : index
    %c0_6 = arith.constant 0 : index
    %17 = vector.load %arg2[%c1, %c0_5, %c0_6] : memref<4x256x128xf32, #tpu.memory_space<vmem>>, vector<1x256x128xf32>
    %18 = vector.shape_cast %17 : vector<1x256x128xf32> to vector<256x128xf32>
    %cst_7 = arith.constant dense<0.000000e+00> : vector<64x128xf32>
    %19 = tpu.matmul %16, %18, %cst_7 {dimension_numbers = #tpu.dot_dimension_numbers<[1], [0], [0], [1], [0, 0, 1, 1], [], []>} : vector<64x256xf32>, vector<256x128xf32>, vector<64x128xf32> -> vector<64x128xf32>
    %20 = arith.addf %11, %19 : vector<64x128xf32>
    %21 = vector.extract_strided_slice %0 {offsets = [0, 2], sizes = [64, 1], strides = [1, 1]} : vector<64x4xi32> to vector<64x1xi32>
    %22 = vector.broadcast %21 : vector<64x1xi32> to vector<64x256xi32>
    %23 = arith.cmpi eq, %1, %22 : vector<64x256xi32>
    %24 = arith.extui %23 : vector<64x256xi1> to vector<64x256xi32>
    %25 = arith.sitofp %24 : vector<64x256xi32> to vector<64x256xf32>
    %c2 = arith.constant 2 : index
    %c0_8 = arith.constant 0 : index
    %c0_9 = arith.constant 0 : index
    %26 = vector.load %arg2[%c2, %c0_8, %c0_9] : memref<4x256x128xf32, #tpu.memory_space<vmem>>, vector<1x256x128xf32>
    %27 = vector.shape_cast %26 : vector<1x256x128xf32> to vector<256x128xf32>
    %cst_10 = arith.constant dense<0.000000e+00> : vector<64x128xf32>
    %28 = tpu.matmul %25, %27, %cst_10 {dimension_numbers = #tpu.dot_dimension_numbers<[1], [0], [0], [1], [0, 0, 1, 1], [], []>} : vector<64x256xf32>, vector<256x128xf32>, vector<64x128xf32> -> vector<64x128xf32>
    %29 = arith.addf %20, %28 : vector<64x128xf32>
    %30 = vector.extract_strided_slice %0 {offsets = [0, 3], sizes = [64, 1], strides = [1, 1]} : vector<64x4xi32> to vector<64x1xi32>
    %31 = vector.broadcast %30 : vector<64x1xi32> to vector<64x256xi32>
    %32 = arith.cmpi eq, %1, %31 : vector<64x256xi32>
    %33 = arith.extui %32 : vector<64x256xi1> to vector<64x256xi32>
    %34 = arith.sitofp %33 : vector<64x256xi32> to vector<64x256xf32>
    %c3 = arith.constant 3 : index
    %c0_11 = arith.constant 0 : index
    %c0_12 = arith.constant 0 : index
    %35 = vector.load %arg2[%c3, %c0_11, %c0_12] : memref<4x256x128xf32, #tpu.memory_space<vmem>>, vector<1x256x128xf32>
    %36 = vector.shape_cast %35 : vector<1x256x128xf32> to vector<256x128xf32>
    %cst_13 = arith.constant dense<0.000000e+00> : vector<64x128xf32>
    %37 = tpu.matmul %34, %36, %cst_13 {dimension_numbers = #tpu.dot_dimension_numbers<[1], [0], [0], [1], [0, 0, 1, 1], [], []>} : vector<64x256xf32>, vector<256x128xf32>, vector<64x128xf32> -> vector<64x128xf32>
    %38 = arith.addf %29, %37 : vector<64x128xf32>
    %c0_14 = arith.constant 0 : index
    %c0_15 = arith.constant 0 : index
    %39 = vector.load %arg3[%c0_14, %c0_15] : memref<64x128xf32, #tpu.memory_space<vmem>>, vector<64x128xf32>
    %40 = arith.addf %39, %38 : vector<64x128xf32>
    %c0_16 = arith.constant 0 : index
    %c0_17 = arith.constant 0 : index
    %41 = vector.load %arg4[%c0_16, %c0_17] : memref<64x128xf32, #tpu.memory_space<vmem>>, vector<64x128xf32>
    tpu.vector_store %arg4[%c0_16, %c0_17], %40 {strides = array<i32>} : memref<64x128xf32, #tpu.memory_space<vmem>>, vector<64x128xf32>,
    return
  }
  func.func @transform_0(%arg0: i32) -> (i32, i32) {
    %c0_i32 = arith.constant 0 : i32
    %c0_i32_0 = arith.constant 0 : i32
    return %arg0, %c0_i32 : i32, i32
  }
  func.func @transform_1(%arg0: i32) -> (i32, i32, i32) {
    %c0_i32 = arith.constant 0 : i32
    %c0_i32_0 = arith.constant 0 : i32
    %c0_i32_1 = arith.constant 0 : i32
    %c0_i32_2 = arith.constant 0 : i32
    return %c0_i32, %c0_i32_0, %c0_i32_1 : i32, i32, i32
  }
  func.func @transform_2(%arg0: i32) -> (i32, i32) {
    %c0_i32 = arith.constant 0 : i32
    %c0_i32_0 = arith.constant 0 : i32
    return %arg0, %c0_i32 : i32, i32
  }
  func.func @transform_3(%arg0: i32) -> (i32, i32) {
    %c0_i32 = arith.constant 0 : i32
    %c0_i32_0 = arith.constant 0 : i32
    return %arg0, %c0_i32 : i32, i32
  }
}

</mosaic_0001>

<llo_original>
// kernel: tpu_custom_call.1
$region0: #{tpu_custom_call.1}
  #allocation0 [shape = 'u32[]', space=smem, size = 0x4, offset = 0x4, fixed_abs, tag = 'smem constant byte address 0x4 - core index']
  #allocation1 [shape = 'u32[144,128]{1,0:T(1,128)}', space=vmem, size = 0x12000, scoped, tag = 'internal scratch']
  %s0 = inlined_call_operand.vmem [shape: s32[256,4], index: 0, kind: input, shape index: {}]
  %s1 = inlined_call_operand.hbm [shape: f32[4,256,128], index: 1, kind: input, shape index: {}]
  %s2 = inlined_call_operand.vmem [shape: f32[256,128], index: 2, kind: input, shape index: {}]
  %s3 = inlined_call_operand.hbm [shape: f32[256,128], index: 3, kind: output, shape index: {}]
  %s4 = sld [smem:[#allocation0]]
  $region49: #{tpu_custom_call.1} parent=0
    _
  %s6 = ssub.s32 1, %s4
  %s7 = scalar_select 0, %s6, %s4
  $region1: #{tpu_custom_call.1} parent=0
    #allocation2 [shape = 'u8[524288]{0}', space=vmem, size = 0x80000, scoped, tag = 'input window, operand 1, single buffered']
    #allocation3 [shape = 's32[2]{0}', space=sflag, size = 0x8, scoped, tag = 'scoped memory for tpu_custom_call.1']
    #allocation4 [shape = 's32[2]{0}', space=sflag, size = 0x8, scoped, tag = 'scoped memory for tpu_custom_call.1']
    #allocation5 [shape = 'u8[65536]{0}', space=vmem, size = 0x10000, scoped, tag = 'output window, operand 0']
    %8 = vsyncpa [#allocation3], 0
    %9 = vsyncpa [#allocation4], 0
    %s10 = scalar_lea.sflag [#allocation4], 1
    %11 = vsyncpa %s10, 0
    loop: start=0, step=1, limit=6
    $region2: #{tpu_custom_call.1} parent=1 // loop_pre_header
      _
    $region3: #{tpu_custom_call.1} parent=1 // loop_header
      %s13 = sphi 0, %s17
      %p14 = scmp.ge.s32.totalorder %s13, 6
      %s23 = sphi 0, %s25
      %s26 = sphi 0, %s23
      %s27 = sphi 0, %s26
      %s43 = sphi 0, %s27
      %s47 = sphi 0, %s47
      %s49 = sphi 0, %s47
      %s50 = sphi 0, %s49
      %s64 = sphi 0, %s50
      %s70 = sphi 0, %s72
      %s73 = sphi 0, %s70
      %s74 = sphi 0, %s73
      %s90 = sphi 0, %s74
      %s96 = sphi 0, %s98
      %s99 = sphi 0, %s96
      %s100 = sphi 0, %s99
      %s116 = sphi 0, %s100
    $region4: #{tpu_custom_call.1} parent=1 // loop_header_branch
      %16 = sbr.rel (%p14) target = $region8
    $region5: #{tpu_custom_call.1} parent=1 // loop_body
      %s18 = ssub.s32 %s13, 1
      %s19 = ssub.s32 %s13, 2
      %s20 = sadd.s32 %s13, 1
      %s21 = ssub.s32 %s13, %s20
      %p22 = scmp.eq.s32.totalorder %s21, 0
      %s24 = sadd.s32 %s23, 1
      %s25 = scalar_select %p22, %s23, %s24
      %p28 = pneg %p22
      %p29 = scmp.eq.s32.totalorder %s13, 3
      %p30 = por %p28, %p29
      %p31 = scmp.ne.s32.totalorder %s23, %s26
      %p32 = scmp.eq.s32.totalorder %s13, 0
      %p33 = por %p31, %p32
      %p34 = scmp.ne.s32.totalorder %s23, %s26
      %p35 = scmp.eq.s32.totalorder %s18, 3
      %p36 = por %p34, %p35
      %p37 = scmp.ne.s32.totalorder %s26, %s27
      %p38 = scmp.eq.s32.totalorder %s18, 0
      %p39 = por %p37, %p38
      %p40 = scmp.ne.s32.totalorder %s26, %s27
      %p41 = scmp.eq.s32.totalorder %s19, 3
      %p42 = por %p40, %p41
      %p44 = scmp.ne.s32.totalorder %s27, %s43
      %p45 = scmp.eq.s32.totalorder %s19, 0
      %p46 = por %p44, %p45
      %s48 = sadd.s32 %s47, 1
      %p51 = scmp.eq.s32.totalorder %s13, 3
      %p52 = scmp.ne.s32.totalorder %s47, %s49
      %p53 = scmp.eq.s32.totalorder %s13, 0
      %p54 = por %p52, %p53
      %p55 = scmp.ne.s32.totalorder %s47, %s49
      %p56 = scmp.eq.s32.totalorder %s18, 3
      %p57 = por %p55, %p56
      %p58 = scmp.ne.s32.totalorder %s49, %s50
      %p59 = scmp.eq.s32.totalorder %s18, 0
      %p60 = por %p58, %p59
      %p61 = scmp.ne.s32.totalorder %s49, %s50
      %p62 = scmp.eq.s32.totalorder %s19, 3
      %p63 = por %p61, %p62
      %p65 = scmp.ne.s32.totalorder %s50, %s64
      %p66 = scmp.eq.s32.totalorder %s19, 0
      %p67 = por %p65, %p66
      %s68 = ssub.s32 %s13, %s20
      %p69 = scmp.eq.s32.totalorder %s68, 0
      %s71 = sadd.s32 %s70, 1
      %s72 = scalar_select %p69, %s70, %s71
      %p75 = pneg %p69
      %p76 = scmp.eq.s32.totalorder %s13, 3
      %p77 = por %p75, %p76
      %p78 = scmp.ne.s32.totalorder %s70, %s73
      %p79 = scmp.eq.s32.totalorder %s13, 0
      %p80 = por %p78, %p79
      %p81 = scmp.ne.s32.totalorder %s70, %s73
      %p82 = scmp.eq.s32.totalorder %s18, 3
      %p83 = por %p81, %p82
      %p84 = scmp.ne.s32.totalorder %s73, %s74
      %p85 = scmp.eq.s32.totalorder %s18, 0
      %p86 = por %p84, %p85
      %p87 = scmp.ne.s32.totalorder %s73, %s74
      %p88 = scmp.eq.s32.totalorder %s19, 3
      %p89 = por %p87, %p88
      %p91 = scmp.ne.s32.totalorder %s74, %s90
      %p92 = scmp.eq.s32.totalorder %s19, 0
      %p93 = por %p91, %p92
      %s94 = ssub.s32 %s13, %s20
      %p95 = scmp.eq.s32.totalorder %s94, 0
      %s97 = sadd.s32 %s96, 1
      %s98 = scalar_select %p95, %s96, %s97
      %p101 = pneg %p95
      %p102 = scmp.eq.s32.totalorder %s13, 3
      %p103 = por %p101, %p102
      %p104 = scmp.ne.s32.totalorder %s96, %s99
      %p105 = scmp.eq.s32.totalorder %s13, 0
      %p106 = por %p104, %p105
      %p107 = scmp.ne.s32.totalorder %s96, %s99
      %p108 = scmp.eq.s32.totalorder %s18, 3
      %p109 = por %p107, %p108
      %p110 = scmp.ne.s32.totalorder %s99, %s100
      %p111 = scmp.eq.s32.totalorder %s18, 0
      %p112 = por %p110, %p111
      %p113 = scmp.ne.s32.totalorder %s99, %s100
      %p114 = scmp.eq.s32.totalorder %s19, 3
      %p115 = por %p113, %p114
      %p117 = scmp.ne.s32.totalorder %s100, %s116
      %p118 = scmp.eq.s32.totalorder %s19, 0
      %p119 = por %p117, %p118
      %p120 = scmp.le.s32.totalorder 1, %s13
      %p121 = scmp.lt.s32.totalorder %s13, 5
      %p122 = pnand %p120, %p121
      %p123 = pneg %p122
      // Predicated region
      $region9: #{tpu_custom_call.1} parent=5 // pred_check
        _
      $region10: #{tpu_custom_call.1} parent=5 // pred_check_branch
        %125 = sbr.rel (%p122) target = $region12
      $region11: #{tpu_custom_call.1} parent=5 // pred_region
        %s126 = ssub.s32 %s13, 1
        // Predicated region
        $region13: #{tpu_custom_call.1} parent=11 // pred_check
          %p127 = pneg %p60
        $region14: #{tpu_custom_call.1} parent=11 // pred_check_branch
          %129 = sbr.rel (%p127) target = $region16
        $region15: #{tpu_custom_call.1} parent=11 // pred_region
          %s131 = ssub.s32 16384, 16384
          %132 = vsyncadd [#allocation3], %s131
          %s133 = sshll.u32 [#allocation2], 4
          %s134 = int_to_ptr.vmem [resolvable:$true] %s133
          %139 = dma.hbm_to_vmem [thread:$0]  %s1, 16384, %s134, [#allocation3], 128, 128, 8
        $region16: #{tpu_custom_call.1} parent=11 // pred_fallthru
          _
      $region12: #{tpu_custom_call.1} parent=5 // pred_fallthru
        _
      %p140 = scmp.lt.s32.totalorder %s13, 4
      // Predicated region
      $region17: #{tpu_custom_call.1} parent=5 // pred_check
        %p141 = pneg %p140
      $region18: #{tpu_custom_call.1} parent=5 // pred_check_branch
        %143 = sbr.rel (%p141) target = $region20
      $region19: #{tpu_custom_call.1} parent=5 // pred_region
        // Predicated region
        $region21: #{tpu_custom_call.1} parent=19 // pred_check
          %p144 = pneg %p33
        $region22: #{tpu_custom_call.1} parent=19 // pred_check_branch
          %146 = sbr.rel (%p144) target = $region24
        $region23: #{tpu_custom_call.1} parent=19 // pred_region
          %s147 = smul.u32 8, %s13
          %p148 = scmp.lt.s32.totalorder %s147, 31
          %s149 = scalar_select %p148, %s147, 31
          %s150 = smul.addr %s149, 8
          %s151 = scalar_lea.vmem %s0, %s150
          %s152 = smul.u32 8, %s13
        $region24: #{tpu_custom_call.1} parent=19 // pred_fallthru
          _
        // Predicated region
        $region25: #{tpu_custom_call.1} parent=19 // pred_check
          %p153 = pneg %p80
        $region26: #{tpu_custom_call.1} parent=19 // pred_check_branch
          %155 = sbr.rel (%p153) target = $region28
        $region27: #{tpu_custom_call.1} parent=19 // pred_region
          %s156 = smul.u32 8, %s13
          %p157 = scmp.lt.s32.totalorder %s156, 31
          %s158 = scalar_select %p157, %s156, 31
          %s159 = smul.addr %s158, 8
          %s160 = scalar_lea.vmem %s2, %s159
          %s161 = smul.u32 8, %s13
        $region28: #{tpu_custom_call.1} parent=19 // pred_fallthru
          _
      $region20: #{tpu_custom_call.1} parent=5 // pred_fallthru
        _
      %p162 = scmp.le.s32.totalorder 1, %s13
      %p163 = scmp.lt.s32.totalorder %s13, 5
      %p164 = pnand %p162, %p163
      %p165 = pneg %p164
      // Predicated region
      $region29: #{tpu_custom_call.1} parent=5 // pred_check
        _
      $region30: #{tpu_custom_call.1} parent=5 // pred_check_branch
        %167 = sbr.rel (%p164) target = $region32
      $region31: #{tpu_custom_call.1} parent=5 // pred_region
        %s168 = ssub.s32 %s13, 1
        // Predicated region
        $region33: #{tpu_custom_call.1} parent=31 // pred_check
          %p169 = pneg %p60
        $region34: #{tpu_custom_call.1} parent=31 // pred_check_branch
          %171 = sbr.rel (%p169) target = $region36
        $region35: #{tpu_custom_call.1} parent=31 // pred_region
          %172 = dma.done [#allocation3], 16384
        $region36: #{tpu_custom_call.1} parent=31 // pred_fallthru
          _
        %s173 = smul.u32 8, %s18
        %p174 = scmp.lt.s32.totalorder %s173, 31
        %s175 = scalar_select %p174, %s173, 31
        %s176 = smul.addr %s175, 8
        %s177 = scalar_lea.vmem %s0, %s176
        %p178 = pneg %p39
        %p179 = pneg %p36
        %p180 = pneg %p60
        %p181 = pneg %p57
        %s182 = smul.u32 8, %s18
        %p183 = scmp.lt.s32.totalorder %s182, 31
        %s184 = scalar_select %p183, %s182, 31
        %s185 = smul.addr %s184, 8
        %s186 = scalar_lea.vmem %s2, %s185
        %p187 = pneg %p86
        %p188 = pneg %p83
        %p189 = pneg %p112
        %p190 = pneg %p109
        %s191 = sand.u32 %s99, 1
        %s192 = scalar_lea.sflag [#allocation4], %s191
        %s193 = sand.u32 %s99, 1
        %s194 = smul.addr %s193, 64
        %s195 = scalar_lea.vmem [#allocation5], %s194
        %s196 = smul.u32 8, %s18
        %p197 = scmp.lt.s32.totalorder %s196, 31
        %s198 = scalar_select %p197, %s196, 31
        %s199 = smul.addr %s198, 8
        %s200 = scalar_lea.vmem %s0, %s199
        %s201 = smul.u32 8, %s18
        %s202 = smul.u32 8, %s18
        %p203 = scmp.lt.s32.totalorder %s202, 31
        %s204 = scalar_select %p203, %s202, 31
        %s205 = smul.addr %s204, 8
        %s206 = scalar_lea.vmem %s2, %s205
        %s207 = smul.u32 8, %s18
        %s208 = smul.u32 8, %s18
        %v209 = vld [vmem:[%s200] sm:$0xff]
        %v210 = vld [vmem:[%s200 + $0x8] sm:$0xff]
        %v211 = vld [vmem:[%s200 + $0x10] sm:$0xff]
        %v212 = vld [vmem:[%s200 + $0x18] sm:$0xff]
        %v213 = vld [vmem:[%s200 + $0x20] sm:$0xff]
        %v214 = vld [vmem:[%s200 + $0x28] sm:$0xff]
        %v215 = vld [vmem:[%s200 + $0x30] sm:$0xff]
        %v216 = vld [vmem:[%s200 + $0x38] sm:$0xff]
        %v217 = vlaneseq
        %v218 = vand.u32 %v217, 127
        %v219 = vadd.s32 %v218, 128
        %220 = vset.pattern.permute.xlu0 0
        %221 = vperm.xlu0 %220, %v209
        %v222 = vpop.permute.xlu0 %221
        %223 = vset.pattern.permute.xlu0 0
        %224 = vperm.xlu0 %223, %v210
        %v225 = vpop.permute.xlu0 %224
        %226 = vset.pattern.permute.xlu0 0
        %227 = vperm.xlu0 %226, %v211
        %v228 = vpop.permute.xlu0 %227
        %229 = vset.pattern.permute.xlu0 0
        %230 = vperm.xlu0 %229, %v212
        %v231 = vpop.permute.xlu0 %230
        %232 = vset.pattern.permute.xlu0 0
        %233 = vperm.xlu0 %232, %v213
        %v234 = vpop.permute.xlu0 %233
        %235 = vset.pattern.permute.xlu0 0
        %236 = vperm.xlu0 %235, %v214
        %v237 = vpop.permute.xlu0 %236
        %238 = vset.pattern.permute.xlu0 0
        %239 = vperm.xlu0 %238, %v215
        %v240 = vpop.permute.xlu0 %239
        %241 = vset.pattern.permute.xlu0 0
        %242 = vperm.xlu0 %241, %v216
        %v243 = vpop.permute.xlu0 %242
        %vm244 = vcmp.eq.s32.totalorder %v218, %v222
        %vm245 = vcmp.eq.s32.totalorder %v219, %v222
        %vm246 = vcmp.eq.s32.totalorder %v218, %v225
        %vm247 = vcmp.eq.s32.totalorder %v219, %v225
        %vm248 = vcmp.eq.s32.totalorder %v218, %v228
        %vm249 = vcmp.eq.s32.totalorder %v219, %v228
        %vm250 = vcmp.eq.s32.totalorder %v218, %v231
        %vm251 = vcmp.eq.s32.totalorder %v219, %v231
        %vm252 = vcmp.eq.s32.totalorder %v218, %v234
        %vm253 = vcmp.eq.s32.totalorder %v219, %v234
        %vm254 = vcmp.eq.s32.totalorder %v218, %v237
        %vm255 = vcmp.eq.s32.totalorder %v219, %v237
        %vm256 = vcmp.eq.s32.totalorder %v218, %v240
        %vm257 = vcmp.eq.s32.totalorder %v219, %v240
        %vm258 = vcmp.eq.s32.totalorder %v218, %v243
        %vm259 = vcmp.eq.s32.totalorder %v219, %v243
        %v260 = vsel %vm244, 1, 0
        %v261 = vsel %vm245, 1, 0
        %v262 = vsel %vm246, 1, 0
        %v263 = vsel %vm247, 1, 0
        %v264 = vsel %vm248, 1, 0
        %v265 = vsel %vm249, 1, 0
        %v266 = vsel %vm250, 1, 0
        %v267 = vsel %vm251, 1, 0
        %v268 = vsel %vm252, 1, 0
        %v269 = vsel %vm253, 1, 0
        %v270 = vsel %vm254, 1, 0
        %v271 = vsel %vm255, 1, 0
        %v272 = vsel %vm256, 1, 0
        %v273 = vsel %vm257, 1, 0
        %v274 = vsel %vm258, 1, 0
        %v275 = vsel %vm259, 1, 0
        %v276 = vcvt.s32.f32 %v260
        %v277 = vcvt.s32.f32 %v261
        %v278 = vcvt.s32.f32 %v262
        %v279 = vcvt.s32.f32 %v263
        %v280 = vcvt.s32.f32 %v264
        %v281 = vcvt.s32.f32 %v265
        %v282 = vcvt.s32.f32 %v266
        %v283 = vcvt.s32.f32 %v267
        %v284 = vcvt.s32.f32 %v268
        %v285 = vcvt.s32.f32 %v269
        %v286 = vcvt.s32.f32 %v270
        %v287 = vcvt.s32.f32 %v271
        %v288 = vcvt.s32.f32 %v272
        %v289 = vcvt.s32.f32 %v273
        %v290 = vcvt.s32.f32 %v274
        %v291 = vcvt.s32.f32 %v275
        %v292 = vld [vmem:[#allocation2] sm:$0xff]
        %v293 = vld [vmem:[#allocation2 + $0x8] sm:$0xff]
        %v294 = vld [vmem:[#allocation2 + $0x10] sm:$0xff]
        %v295 = vld [vmem:[#allocation2 + $0x18] sm:$0xff]
        %v296 = vld [vmem:[#allocation2 + $0x20] sm:$0xff]
        %v297 = vld [vmem:[#allocation2 + $0x28] sm:$0xff]
        %v298 = vld [vmem:[#allocation2 + $0x30] sm:$0xff]
        %v299 = vld [vmem:[#allocation2 + $0x38] sm:$0xff]
        %v300 = vld [vmem:[#allocation2 + $0x40] sm:$0xff]
        %v301 = vld [vmem:[#allocation2 + $0x48] sm:$0xff]
        %v302 = vld [vmem:[#allocation2 + $0x50] sm:$0xff]
        %v303 = vld [vmem:[#allocation2 + $0x58] sm:$0xff]
        %v304 = vld [vmem:[#allocation2 + $0x60] sm:$0xff]
        %v305 = vld [vmem:[#allocation2 + $0x68] sm:$0xff]
        %v306 = vld [vmem:[#allocation2 + $0x70] sm:$0xff]
        %v307 = vld [vmem:[#allocation2 + $0x78] sm:$0xff]
        %v308 = vld [vmem:[#allocation2 + $0x80] sm:$0xff]
        %v309 = vld [vmem:[#allocation2 + $0x88] sm:$0xff]
        %v310 = vld [vmem:[#allocation2 + $0x90] sm:$0xff]
        %v311 = vld [vmem:[#allocation2 + $0x98] sm:$0xff]
        %v312 = vld [vmem:[#allocation2 + $0xa0] sm:$0xff]
        %v313 = vld [vmem:[#allocation2 + $0xa8] sm:$0xff]
        %v314 = vld [vmem:[#allocation2 + $0xb0] sm:$0xff]
        %v315 = vld [vmem:[#allocation2 + $0xb8] sm:$0xff]
        %v316 = vld [vmem:[#allocation2 + $0xc0] sm:$0xff]
        %v317 = vld [vmem:[#allocation2 + $0xc8] sm:$0xff]
        %v318 = vld [vmem:[#allocation2 + $0xd0] sm:$0xff]
        %v319 = vld [vmem:[#allocation2 + $0xd8] sm:$0xff]
        %v320 = vld [vmem:[#allocation2 + $0xe0] sm:$0xff]
        %v321 = vld [vmem:[#allocation2 + $0xe8] sm:$0xff]
        %v322 = vld [vmem:[#allocation2 + $0xf0] sm:$0xff]
        %v323 = vld [vmem:[#allocation2 + $0xf8] sm:$0xff]
        %324 = vset.pattern.permute.xlu0 1
        %325 = vperm.xlu0 %324, %v209
        %v326 = vpop.permute.xlu0 %325
        %327 = vset.pattern.permute.xlu0 1
        %328 = vperm.xlu0 %327, %v210
        %v329 = vpop.permute.xlu0 %328
        %330 = vset.pattern.permute.xlu0 1
        %331 = vperm.xlu0 %330, %v211
        %v332 = vpop.permute.xlu0 %331
        %333 = vset.pattern.permute.xlu0 1
        %334 = vperm.xlu0 %333, %v212
        %v335 = vpop.permute.xlu0 %334
        %336 = vset.pattern.permute.xlu0 1
        %337 = vperm.xlu0 %336, %v213
        %v338 = vpop.permute.xlu0 %337
        %339 = vset.pattern.permute.xlu0 1
        %340 = vperm.xlu0 %339, %v214
        %v341 = vpop.permute.xlu0 %340
        %342 = vset.pattern.permute.xlu0 1
        %343 = vperm.xlu0 %342, %v215
        %v344 = vpop.permute.xlu0 %343
        %345 = vset.pattern.permute.xlu0 1
        %346 = vperm.xlu0 %345, %v216
        %v347 = vpop.permute.xlu0 %346
        %vm348 = vcmp.eq.s32.totalorder %v218, %v326
        %vm349 = vcmp.eq.s32.totalorder %v219, %v326
        %vm350 = vcmp.eq.s32.totalorder %v218, %v329
        %vm351 = vcmp.eq.s32.totalorder %v219, %v329
        %vm352 = vcmp.eq.s32.totalorder %v218, %v332
        %vm353 = vcmp.eq.s32.totalorder %v219, %v332
        %vm354 = vcmp.eq.s32.totalorder %v218, %v335
        %vm355 = vcmp.eq.s32.totalorder %v219, %v335
        %vm356 = vcmp.eq.s32.totalorder %v218, %v338
        %vm357 = vcmp.eq.s32.totalorder %v219, %v338
        %vm358 = vcmp.eq.s32.totalorder %v218, %v341
        %vm359 = vcmp.eq.s32.totalorder %v219, %v341
        %vm360 = vcmp.eq.s32.totalorder %v218, %v344
        %vm361 = vcmp.eq.s32.totalorder %v219, %v344
        %vm362 = vcmp.eq.s32.totalorder %v218, %v347
        %vm363 = vcmp.eq.s32.totalorder %v219, %v347
        %v364 = vsel %vm348, 1, 0
        %v365 = vsel %vm349, 1, 0
        %v366 = vsel %vm350, 1, 0
        %v367 = vsel %vm351, 1, 0
        %v368 = vsel %vm352, 1, 0
        %v369 = vsel %vm353, 1, 0
        %v370 = vsel %vm354, 1, 0
        %v371 = vsel %vm355, 1, 0
        %v372 = vsel %vm356, 1, 0
        %v373 = vsel %vm357, 1, 0
        %v374 = vsel %vm358, 1, 0
        %v375 = vsel %vm359, 1, 0
        %v376 = vsel %vm360, 1, 0
        %v377 = vsel %vm361, 1, 0
        %v378 = vsel %vm362, 1, 0
        %v379 = vsel %vm363, 1, 0
        %v380 = vcvt.s32.f32 %v364
        %v381 = vcvt.s32.f32 %v365
        %v382 = vcvt.s32.f32 %v366
        %v383 = vcvt.s32.f32 %v367
        %v384 = vcvt.s32.f32 %v368
        %v385 = vcvt.s32.f32 %v369
        %v386 = vcvt.s32.f32 %v370
        %v387 = vcvt.s32.f32 %v371
        %v388 = vcvt.s32.f32 %v372
        %v389 = vcvt.s32.f32 %v373
        %v390 = vcvt.s32.f32 %v374
        %v391 = vcvt.s32.f32 %v375
        %v392 = vcvt.s32.f32 %v376
        %v393 = vcvt.s32.f32 %v377
        %v394 = vcvt.s32.f32 %v378
        %v395 = vcvt.s32.f32 %v379
        %s396 = scalar_lea.vmem [#allocation2], 256
        %v397 = vld [vmem:[%s396] sm:$0xff]
        %v398 = vld [vmem:[%s396 + $0x8] sm:$0xff]
        %v399 = vld [vmem:[%s396 + $0x10] sm:$0xff]
        %v400 = vld [vmem:[%s396 + $0x18] sm:$0xff]
        %v401 = vld [vmem:[%s396 + $0x20] sm:$0xff]
        %v402 = vld [vmem:[%s396 + $0x28] sm:$0xff]
        %v403 = vld [vmem:[%s396 + $0x30] sm:$0xff]
        %v404 = vld [vmem:[%s396 + $0x38] sm:$0xff]
        %v405 = vld [vmem:[%s396 + $0x40] sm:$0xff]
        %v406 = vld [vmem:[%s396 + $0x48] sm:$0xff]
        %v407 = vld [vmem:[%s396 + $0x50] sm:$0xff]
        %v408 = vld [vmem:[%s396 + $0x58] sm:$0xff]
        %v409 = vld [vmem:[%s396 + $0x60] sm:$0xff]
        %v410 = vld [vmem:[%s396 + $0x68] sm:$0xff]
        %v411 = vld [vmem:[%s396 + $0x70] sm:$0xff]
        %v412 = vld [vmem:[%s396 + $0x78] sm:$0xff]
        %v413 = vld [vmem:[%s396 + $0x80] sm:$0xff]
        %v414 = vld [vmem:[%s396 + $0x88] sm:$0xff]
        %v415 = vld [vmem:[%s396 + $0x90] sm:$0xff]
        %v416 = vld [vmem:[%s396 + $0x98] sm:$0xff]
        %v417 = vld [vmem:[%s396 + $0xa0] sm:$0xff]
        %v418 = vld [vmem:[%s396 + $0xa8] sm:$0xff]
        %v419 = vld [vmem:[%s396 + $0xb0] sm:$0xff]
        %v420 = vld [vmem:[%s396 + $0xb8] sm:$0xff]
        %v421 = vld [vmem:[%s396 + $0xc0] sm:$0xff]
        %v422 = vld [vmem:[%s396 + $0xc8] sm:$0xff]
        %v423 = vld [vmem:[%s396 + $0xd0] sm:$0xff]
        %v424 = vld [vmem:[%s396 + $0xd8] sm:$0xff]
        %v425 = vld [vmem:[%s396 + $0xe0] sm:$0xff]
        %v426 = vld [vmem:[%s396 + $0xe8] sm:$0xff]
        %v427 = vld [vmem:[%s396 + $0xf0] sm:$0xff]
        %v428 = vld [vmem:[%s396 + $0xf8] sm:$0xff]
        %429 = vmatprep.subr.mxu0 0.0
        %430 = vmatpush1.msra.mxu0 %v412
        %431 = vmatprep.subr.mxu0 0.0
        %432 = vmatpush1.msra.mxu0 %v411
        %433 = vmatprep.subr.mxu0 0.0
        %434 = vmatpush1.msra.mxu0 %v410
        %435 = vmatprep.subr.mxu0 0.0
        %436 = vmatpush1.msra.mxu0 %v409
        %437 = vmatprep.subr.mxu0 0.0
        %438 = vmatpush1.msra.mxu0 %v408
        %439 = vmatprep.subr.mxu0 0.0
        %440 = vmatpush1.msra.mxu0 %v407
        %441 = vmatprep.subr.mxu0 0.0
        %442 = vmatpush1.msra.mxu0 %v406
        %443 = vmatprep.subr.mxu0 0.0
        %444 = vmatpush1.msra.mxu0 %v405
        %445 = vmatprep.subr.mxu0 0.0
        %446 = vmatpush1.msra.mxu0 %v404
        %447 = vmatprep.subr.mxu0 0.0
        %448 = vmatpush1.msra.mxu0 %v403
        %449 = vmatprep.subr.mxu0 0.0
        %450 = vmatpush1.msra.mxu0 %v402
        %451 = vmatprep.subr.mxu0 0.0
        %452 = vmatpush1.msra.mxu0 %v401
        %453 = vmatprep.subr.mxu0 0.0
        %454 = vmatpush1.msra.mxu0 %v400
        %455 = vmatprep.subr.mxu0 0.0
        %456 = vmatpush1.msra.mxu0 %v399
        %457 = vmatprep.subr.mxu0 0.0
        %458 = vmatpush1.msra.mxu0 %v398
        %459 = vmatprep.subr.mxu0 0.0
        %460 = vmatpush1.msra.mxu0 %v397
        %461 = vmatprep.subr.mxu0 0.0
        %462 = vmatpush2.msra.mxu0 %v428
        %463 = vmatprep.subr.mxu0 0.0
        %464 = vmatpush2.msra.mxu0 %v427
        %465 = vmatprep.subr.mxu0 0.0
        %466 = vmatpush2.msra.mxu0 %v426
        %467 = vmatprep.subr.mxu0 0.0
        %468 = vmatpush2.msra.mxu0 %v425
        %469 = vmatprep.subr.mxu0 0.0
        %470 = vmatpush2.msra.mxu0 %v424
        %471 = vmatprep.subr.mxu0 0.0
        %472 = vmatpush2.msra.mxu0 %v423
        %473 = vmatprep.subr.mxu0 0.0
        %474 = vmatpush2.msra.mxu0 %v422
        %475 = vmatprep.subr.mxu0 0.0
        %476 = vmatpush2.msra.mxu0 %v421
        %477 = vmatprep.subr.mxu0 0.0
        %478 = vmatpush2.msra.mxu0 %v420
        %479 = vmatprep.subr.mxu0 0.0
        %480 = vmatpush2.msra.mxu0 %v419
        %481 = vmatprep.subr.mxu0 0.0
        %482 = vmatpush2.msra.mxu0 %v418
        %483 = vmatprep.subr.mxu0 0.0
        %484 = vmatpush2.msra.mxu0 %v417
        %485 = vmatprep.subr.mxu0 0.0
        %486 = vmatpush2.msra.mxu0 %v416
        %487 = vmatprep.subr.mxu0 0.0
        %488 = vmatpush2.msra.mxu0 %v415
        %489 = vmatprep.subr.mxu0 0.0
        %490 = vmatpush2.msra.mxu0 %v414
        %491 = vmatprep.subr.mxu0 0.0
        %492 = vmatpush2.msra.mxu0 %v413
        %493 = vmatprep.mubr.f32.mxu0 %v381
        %494 = vmatmul.mubr.f32.gmra.mxu0 %v380
        %v495 = vpop.f32.mrf.mxu0
        %v496 = vadd.f32 0.0, %v495
        %v497 = vpop.f32.mrf.mxu0
        %498 = vmatprep.mubr.f32.mxu0 %v383
        %499 = vmatmul.mubr.f32.gmra.mxu0 %v382
        %v500 = vpop.f32.mrf.mxu0
        %v501 = vadd.f32 0.0, %v500
        %v502 = vpop.f32.mrf.mxu0
        %503 = vmatprep.mubr.f32.mxu0 %v385
        %504 = vmatmul.mubr.f32.gmra.mxu0 %v384
        %v505 = vpop.f32.mrf.mxu0
        %v506 = vadd.f32 0.0, %v505
        %v507 = vpop.f32.mrf.mxu0
        %508 = vmatprep.mubr.f32.mxu0 %v387
        %509 = vmatmul.mubr.f32.gmra.mxu0 %v386
        %v510 = vpop.f32.mrf.mxu0
        %v511 = vadd.f32 0.0, %v510
        %v512 = vpop.f32.mrf.mxu0
        %513 = vmatprep.mubr.f32.mxu0 %v389
        %514 = vmatmul.mubr.f32.gmra.mxu0 %v388
        %v515 = vpop.f32.mrf.mxu0
        %v516 = vadd.f32 0.0, %v515
        %v517 = vpop.f32.mrf.mxu0
        %518 = vmatprep.mubr.f32.mxu0 %v391
        %519 = vmatmul.mubr.f32.gmra.mxu0 %v390
        %v520 = vpop.f32.mrf.mxu0
        %v521 = vadd.f32 0.0, %v520
        %v522 = vpop.f32.mrf.mxu0
        %523 = vmatprep.mubr.f32.mxu0 %v393
        %524 = vmatmul.mubr.f32.gmra.mxu0 %v392
        %v525 = vpop.f32.mrf.mxu0
        %v526 = vadd.f32 0.0, %v525
        %v527 = vpop.f32.mrf.mxu0
        %528 = vmatprep.mubr.f32.mxu0 %v395
        %529 = vmatmul.mubr.f32.gmra.mxu0 %v394
        %v530 = vpop.f32.mrf.mxu0
        %v531 = vadd.f32 0.0, %v530
        %v532 = vpop.f32.mrf.mxu0
        %533 = vdwg.mxu0
        %534 = vmatprep.subr.mxu0 0.0
        %535 = vmatpush1.msra.mxu0 %v307
        %536 = vmatprep.subr.mxu0 0.0
        %537 = vmatpush1.msra.mxu0 %v306
        %538 = vmatprep.subr.mxu0 0.0
        %539 = vmatpush1.msra.mxu0 %v305
        %540 = vmatprep.subr.mxu0 0.0
        %541 = vmatpush1.msra.mxu0 %v304
        %542 = vmatprep.subr.mxu0 0.0
        %543 = vmatpush1.msra.mxu0 %v303
        %544 = vmatprep.subr.mxu0 0.0
        %545 = vmatpush1.msra.mxu0 %v302
        %546 = vmatprep.subr.mxu0 0.0
        %547 = vmatpush1.msra.mxu0 %v301
        %548 = vmatprep.subr.mxu0 0.0
        %549 = vmatpush1.msra.mxu0 %v300
        %550 = vmatprep.subr.mxu0 0.0
        %551 = vmatpush1.msra.mxu0 %v299
        %552 = vmatprep.subr.mxu0 0.0
        %553 = vmatpush1.msra.mxu0 %v298
        %554 = vmatprep.subr.mxu0 0.0
        %555 = vmatpush1.msra.mxu0 %v297
        %556 = vmatprep.subr.mxu0 0.0
        %557 = vmatpush1.msra.mxu0 %v296
        %558 = vmatprep.subr.mxu0 0.0
        %559 = vmatpush1.msra.mxu0 %v295
        %560 = vmatprep.subr.mxu0 0.0
        %561 = vmatpush1.msra.mxu0 %v294
        %562 = vmatprep.subr.mxu0 0.0
        %563 = vmatpush1.msra.mxu0 %v293
        %564 = vmatprep.subr.mxu0 0.0
        %565 = vmatpush1.msra.mxu0 %v292
        %566 = vmatprep.subr.mxu0 0.0
        %567 = vmatpush2.msra.mxu0 %v323
        %568 = vmatprep.subr.mxu0 0.0
        %569 = vmatpush2.msra.mxu0 %v322
        %570 = vmatprep.subr.mxu0 0.0
        %571 = vmatpush2.msra.mxu0 %v321
        %572 = vmatprep.subr.mxu0 0.0
        %573 = vmatpush2.msra.mxu0 %v320
        %574 = vmatprep.subr.mxu0 0.0
        %575 = vmatpush2.msra.mxu0 %v319
        %576 = vmatprep.subr.mxu0 0.0
        %577 = vmatpush2.msra.mxu0 %v318
        %578 = vmatprep.subr.mxu0 0.0
        %579 = vmatpush2.msra.mxu0 %v317
        %580 = vmatprep.subr.mxu0 0.0
        %581 = vmatpush2.msra.mxu0 %v316
        %582 = vmatprep.subr.mxu0 0.0
        %583 = vmatpush2.msra.mxu0 %v315
        %584 = vmatprep.subr.mxu0 0.0
        %585 = vmatpush2.msra.mxu0 %v314
        %586 = vmatprep.subr.mxu0 0.0
        %587 = vmatpush2.msra.mxu0 %v313
        %588 = vmatprep.subr.mxu0 0.0
        %589 = vmatpush2.msra.mxu0 %v312
        %590 = vmatprep.subr.mxu0 0.0
        %591 = vmatpush2.msra.mxu0 %v311
        %592 = vmatprep.subr.mxu0 0.0
        %593 = vmatpush2.msra.mxu0 %v310
        %594 = vmatprep.subr.mxu0 0.0
        %595 = vmatpush2.msra.mxu0 %v309
        %596 = vmatprep.subr.mxu0 0.0
        %597 = vmatpush2.msra.mxu0 %v308
        %598 = vmatprep.mubr.f32.mxu0 %v277
        %599 = vmatmul.mubr.f32.gmra.mxu0 %v276
        %v600 = vpop.f32.mrf.mxu0
        %v601 = vadd.f32 %v496, %v600
        %v602 = vpop.f32.mrf.mxu0
        %603 = vmatprep.mubr.f32.mxu0 %v279
        %604 = vmatmul.mubr.f32.gmra.mxu0 %v278
        %v605 = vpop.f32.mrf.mxu0
        %v606 = vadd.f32 %v501, %v605
        %v607 = vpop.f32.mrf.mxu0
        %608 = vmatprep.mubr.f32.mxu0 %v281
        %609 = vmatmul.mubr.f32.gmra.mxu0 %v280
        %v610 = vpop.f32.mrf.mxu0
        %v611 = vadd.f32 %v506, %v610
        %v612 = vpop.f32.mrf.mxu0
        %613 = vmatprep.mubr.f32.mxu0 %v283
        %614 = vmatmul.mubr.f32.gmra.mxu0 %v282
        %v615 = vpop.f32.mrf.mxu0
        %v616 = vadd.f32 %v511, %v615
        %v617 = vpop.f32.mrf.mxu0
        %618 = vmatprep.mubr.f32.mxu0 %v285
        %619 = vmatmul.mubr.f32.gmra.mxu0 %v284
        %v620 = vpop.f32.mrf.mxu0
        %v621 = vadd.f32 %v516, %v620
        %v622 = vpop.f32.mrf.mxu0
        %623 = vmatprep.mubr.f32.mxu0 %v287
        %624 = vmatmul.mubr.f32.gmra.mxu0 %v286
        %v625 = vpop.f32.mrf.mxu0
        %v626 = vadd.f32 %v521, %v625
        %v627 = vpop.f32.mrf.mxu0
        %628 = vmatprep.mubr.f32.mxu0 %v289
        %629 = vmatmul.mubr.f32.gmra.mxu0 %v288
        %v630 = vpop.f32.mrf.mxu0
        %v631 = vadd.f32 %v526, %v630
        %v632 = vpop.f32.mrf.mxu0
        %633 = vmatprep.mubr.f32.mxu0 %v291
        %634 = vmatmul.mubr.f32.gmra.mxu0 %v290
        %v635 = vpop.f32.mrf.mxu0
        %v636 = vadd.f32 %v531, %v635
        %v637 = vpop.f32.mrf.mxu0
        %638 = vdwg.mxu0
        %639 = vset.pattern.permute.xlu0 2
        %640 = vperm.xlu0 %639, %v209
        %v641 = vpop.permute.xlu0 %640
        %642 = vset.pattern.permute.xlu0 2
        %643 = vperm.xlu0 %642, %v210
        %v644 = vpop.permute.xlu0 %643
        %645 = vset.pattern.permute.xlu0 2
        %646 = vperm.xlu0 %645, %v211
        %v647 = vpop.permute.xlu0 %646
        %648 = vset.pattern.permute.xlu0 2
        %649 = vperm.xlu0 %648, %v212
        %v650 = vpop.permute.xlu0 %649
        %651 = vset.pattern.permute.xlu0 2
        %652 = vperm.xlu0 %651, %v213
        %v653 = vpop.permute.xlu0 %652
        %654 = vset.pattern.permute.xlu0 2
        %655 = vperm.xlu0 %654, %v214
        %v656 = vpop.permute.xlu0 %655
        %657 = vset.pattern.permute.xlu0 2
        %658 = vperm.xlu0 %657, %v215
        %v659 = vpop.permute.xlu0 %658
        %660 = vset.pattern.permute.xlu0 2
        %661 = vperm.xlu0 %660, %v216
        %v662 = vpop.permute.xlu0 %661
        %vm663 = vcmp.eq.s32.totalorder %v218, %v641
        %vm664 = vcmp.eq.s32.totalorder %v219, %v641
        %vm665 = vcmp.eq.s32.totalorder %v218, %v644
        %vm666 = vcmp.eq.s32.totalorder %v219, %v644
        %vm667 = vcmp.eq.s32.totalorder %v218, %v647
        %vm668 = vcmp.eq.s32.totalorder %v219, %v647
        %vm669 = vcmp.eq.s32.totalorder %v218, %v650
        %vm670 = vcmp.eq.s32.totalorder %v219, %v650
        %vm671 = vcmp.eq.s32.totalorder %v218, %v653
        %vm672 = vcmp.eq.s32.totalorder %v219, %v653
        %vm673 = vcmp.eq.s32.totalorder %v218, %v656
        %vm674 = vcmp.eq.s32.totalorder %v219, %v656
        %vm675 = vcmp.eq.s32.totalorder %v218, %v659
        %vm676 = vcmp.eq.s32.totalorder %v219, %v659
        %vm677 = vcmp.eq.s32.totalorder %v218, %v662
        %vm678 = vcmp.eq.s32.totalorder %v219, %v662
        %v679 = vsel %vm663, 1, 0
        %v680 = vsel %vm664, 1, 0
        %v681 = vsel %vm665, 1, 0
        %v682 = vsel %vm666, 1, 0
        %v683 = vsel %vm667, 1, 0
        %v684 = vsel %vm668, 1, 0
        %v685 = vsel %vm669, 1, 0
        %v686 = vsel %vm670, 1, 0
        %v687 = vsel %vm671, 1, 0
        %v688 = vsel %vm672, 1, 0
        %v689 = vsel %vm673, 1, 0
        %v690 = vsel %vm674, 1, 0
        %v691 = vsel %vm675, 1, 0
        %v692 = vsel %vm676, 1, 0
        %v693 = vsel %vm677, 1, 0
        %v694 = vsel %vm678, 1, 0
        %v695 = vcvt.s32.f32 %v679
        %v696 = vcvt.s32.f32 %v680
        %v697 = vcvt.s32.f32 %v681
        %v698 = vcvt.s32.f32 %v682
        %v699 = vcvt.s32.f32 %v683
        %v700 = vcvt.s32.f32 %v684
        %v701 = vcvt.s32.f32 %v685
        %v702 = vcvt.s32.f32 %v686
        %v703 = vcvt.s32.f32 %v687
        %v704 = vcvt.s32.f32 %v688
        %v705 = vcvt.s32.f32 %v689
        %v706 = vcvt.s32.f32 %v690
        %v707 = vcvt.s32.f32 %v691
        %v708 = vcvt.s32.f32 %v692
        %v709 = vcvt.s32.f32 %v693
        %v710 = vcvt.s32.f32 %v694
        %s711 = scalar_lea.vmem [#allocation2], 512
        %v712 = vld [vmem:[%s711] sm:$0xff]
        %v713 = vld [vmem:[%s711 + $0x8] sm:$0xff]
        %v714 = vld [vmem:[%s711 + $0x10] sm:$0xff]
        %v715 = vld [vmem:[%s711 + $0x18] sm:$0xff]
        %v716 = vld [vmem:[%s711 + $0x20] sm:$0xff]
        %v717 = vld [vmem:[%s711 + $0x28] sm:$0xff]
        %v718 = vld [vmem:[%s711 + $0x30] sm:$0xff]
        %v719 = vld [vmem:[%s711 + $0x38] sm:$0xff]
        %v720 = vld [vmem:[%s711 + $0x40] sm:$0xff]
        %v721 = vld [vmem:[%s711 + $0x48] sm:$0xff]
        %v722 = vld [vmem:[%s711 + $0x50] sm:$0xff]
        %v723 = vld [vmem:[%s711 + $0x58] sm:$0xff]
        %v724 = vld [vmem:[%s711 + $0x60] sm:$0xff]
        %v725 = vld [vmem:[%s711 + $0x68] sm:$0xff]
        %v726 = vld [vmem:[%s711 + $0x70] sm:$0xff]
        %v727 = vld [vmem:[%s711 + $0x78] sm:$0xff]
        %v728 = vld [vmem:[%s711 + $0x80] sm:$0xff]
        %v729 = vld [vmem:[%s711 + $0x88] sm:$0xff]
        %v730 = vld [vmem:[%s711 + $0x90] sm:$0xff]
        %v731 = vld [vmem:[%s711 + $0x98] sm:$0xff]
        %v732 = vld [vmem:[%s711 + $0xa0] sm:$0xff]
        %v733 = vld [vmem:[%s711 + $0xa8] sm:$0xff]
        %v734 = vld [vmem:[%s711 + $0xb0] sm:$0xff]
        %v735 = vld [vmem:[%s711 + $0xb8] sm:$0xff]
        %v736 = vld [vmem:[%s711 + $0xc0] sm:$0xff]
        %v737 = vld [vmem:[%s711 + $0xc8] sm:$0xff]
        %v738 = vld [vmem:[%s711 + $0xd0] sm:$0xff]
        %v739 = vld [vmem:[%s711 + $0xd8] sm:$0xff]
        %v740 = vld [vmem:[%s711 + $0xe0] sm:$0xff]
        %v741 = vld [vmem:[%s711 + $0xe8] sm:$0xff]
        %v742 = vld [vmem:[%s711 + $0xf0] sm:$0xff]
        %v743 = vld [vmem:[%s711 + $0xf8] sm:$0xff]
        %744 = vmatprep.subr.mxu0 0.0
        %745 = vmatpush1.msra.mxu0 %v727
        %746 = vmatprep.subr.mxu0 0.0
        %747 = vmatpush1.msra.mxu0 %v726
        %748 = vmatprep.subr.mxu0 0.0
        %749 = vmatpush1.msra.mxu0 %v725
        %750 = vmatprep.subr.mxu0 0.0
        %751 = vmatpush1.msra.mxu0 %v724
        %752 = vmatprep.subr.mxu0 0.0
        %753 = vmatpush1.msra.mxu0 %v723
        %754 = vmatprep.subr.mxu0 0.0
        %755 = vmatpush1.msra.mxu0 %v722
        %756 = vmatprep.subr.mxu0 0.0
        %757 = vmatpush1.msra.mxu0 %v721
        %758 = vmatprep.subr.mxu0 0.0
        %759 = vmatpush1.msra.mxu0 %v720
        %760 = vmatprep.subr.mxu0 0.0
        %761 = vmatpush1.msra.mxu0 %v719
        %762 = vmatprep.subr.mxu0 0.0
        %763 = vmatpush1.msra.mxu0 %v718
        %764 = vmatprep.subr.mxu0 0.0
        %765 = vmatpush1.msra.mxu0 %v717
        %766 = vmatprep.subr.mxu0 0.0
        %767 = vmatpush1.msra.mxu0 %v716
        %768 = vmatprep.subr.mxu0 0.0
        %769 = vmatpush1.msra.mxu0 %v715
        %770 = vmatprep.subr.mxu0 0.0
        %771 = vmatpush1.msra.mxu0 %v714
        %772 = vmatprep.subr.mxu0 0.0
        %773 = vmatpush1.msra.mxu0 %v713
        %774 = vmatprep.subr.mxu0 0.0
        %775 = vmatpush1.msra.mxu0 %v712
        %776 = vmatprep.subr.mxu0 0.0
        %777 = vmatpush2.msra.mxu0 %v743
        %778 = vmatprep.subr.mxu0 0.0
        %779 = vmatpush2.msra.mxu0 %v742
        %780 = vmatprep.subr.mxu0 0.0
        %781 = vmatpush2.msra.mxu0 %v741
        %782 = vmatprep.subr.mxu0 0.0
        %783 = vmatpush2.msra.mxu0 %v740
        %784 = vmatprep.subr.mxu0 0.0
        %785 = vmatpush2.msra.mxu0 %v739
        %786 = vmatprep.subr.mxu0 0.0
        %787 = vmatpush2.msra.mxu0 %v738
        %788 = vmatprep.subr.mxu0 0.0
        %789 = vmatpush2.msra.mxu0 %v737
        %790 = vmatprep.subr.mxu0 0.0
        %791 = vmatpush2.msra.mxu0 %v736
        %792 = vmatprep.subr.mxu0 0.0
        %793 = vmatpush2.msra.mxu0 %v735
        %794 = vmatprep.subr.mxu0 0.0
        %795 = vmatpush2.msra.mxu0 %v734
        %796 = vmatprep.subr.mxu0 0.0
        %797 = vmatpush2.msra.mxu0 %v733
        %798 = vmatprep.subr.mxu0 0.0
        %799 = vmatpush2.msra.mxu0 %v732
        %800 = vmatprep.subr.mxu0 0.0
        %801 = vmatpush2.msra.mxu0 %v731
        %802 = vmatprep.subr.mxu0 0.0
        %803 = vmatpush2.msra.mxu0 %v730
        %804 = vmatprep.subr.mxu0 0.0
        %805 = vmatpush2.msra.mxu0 %v729
        %806 = vmatprep.subr.mxu0 0.0
        %807 = vmatpush2.msra.mxu0 %v728
        %808 = vmatprep.mubr.f32.mxu0 %v696
        %809 = vmatmul.mubr.f32.gmra.mxu0 %v695
        %v810 = vpop.f32.mrf.mxu0
        %v811 = vadd.f32 0.0, %v810
        %v812 = vpop.f32.mrf.mxu0
        %813 = vmatprep.mubr.f32.mxu0 %v698
        %814 = vmatmul.mubr.f32.gmra.mxu0 %v697
        %v815 = vpop.f32.mrf.mxu0
        %v816 = vadd.f32 0.0, %v815
        %v817 = vpop.f32.mrf.mxu0
        %818 = vmatprep.mubr.f32.mxu0 %v700
        %819 = vmatmul.mubr.f32.gmra.mxu0 %v699
        %v820 = vpop.f32.mrf.mxu0
        %v821 = vadd.f32 0.0, %v820
        %v822 = vpop.f32.mrf.mxu0
        %823 = vmatprep.mubr.f32.mxu0 %v702
        %824 = vmatmul.mubr.f32.gmra.mxu0 %v701
        %v825 = vpop.f32.mrf.mxu0
        %v826 = vadd.f32 0.0, %v825
        %v827 = vpop.f32.mrf.mxu0
        %828 = vmatprep.mubr.f32.mxu0 %v704
        %829 = vmatmul.mubr.f32.gmra.mxu0 %v703
        %v830 = vpop.f32.mrf.mxu0
        %v831 = vadd.f32 0.0, %v830
        %v832 = vpop.f32.mrf.mxu0
        %833 = vmatprep.mubr.f32.mxu0 %v706
        %834 = vmatmul.mubr.f32.gmra.mxu0 %v705
        %v835 = vpop.f32.mrf.mxu0
        %v836 = vadd.f32 0.0, %v835
        %v837 = vpop.f32.mrf.mxu0
        %838 = vmatprep.mubr.f32.mxu0 %v708
        %839 = vmatmul.mubr.f32.gmra.mxu0 %v707
        %v840 = vpop.f32.mrf.mxu0
        %v841 = vadd.f32 0.0, %v840
        %v842 = vpop.f32.mrf.mxu0
        %843 = vmatprep.mubr.f32.mxu0 %v710
        %844 = vmatmul.mubr.f32.gmra.mxu0 %v709
        %v845 = vpop.f32.mrf.mxu0
        %v846 = vadd.f32 0.0, %v845
        %v847 = vpop.f32.mrf.mxu0
        %848 = vdwg.mxu0
        %v849 = vadd.f32 %v601, %v811
        %v850 = vadd.f32 %v606, %v816
        %v851 = vadd.f32 %v611, %v821
        %v852 = vadd.f32 %v616, %v826
        %v853 = vadd.f32 %v621, %v831
        %v854 = vadd.f32 %v626, %v836
        %v855 = vadd.f32 %v631, %v841
        %v856 = vadd.f32 %v636, %v846
        %857 = vset.pattern.permute.xlu0 3
        %858 = vperm.xlu0 %857, %v209
        %v859 = vpop.permute.xlu0 %858
        %860 = vset.pattern.permute.xlu0 3
        %861 = vperm.xlu0 %860, %v210
        %v862 = vpop.permute.xlu0 %861
        %863 = vset.pattern.permute.xlu0 3
        %864 = vperm.xlu0 %863, %v211
        %v865 = vpop.permute.xlu0 %864
        %866 = vset.pattern.permute.xlu0 3
        %867 = vperm.xlu0 %866, %v212
        %v868 = vpop.permute.xlu0 %867
        %869 = vset.pattern.permute.xlu0 3
        %870 = vperm.xlu0 %869, %v213
        %v871 = vpop.permute.xlu0 %870
        %872 = vset.pattern.permute.xlu0 3
        %873 = vperm.xlu0 %872, %v214
        %v874 = vpop.permute.xlu0 %873
        %875 = vset.pattern.permute.xlu0 3
        %876 = vperm.xlu0 %875, %v215
        %v877 = vpop.permute.xlu0 %876
        %878 = vset.pattern.permute.xlu0 3
        %879 = vperm.xlu0 %878, %v216
        %v880 = vpop.permute.xlu0 %879
        %vm881 = vcmp.eq.s32.totalorder %v218, %v859
        %vm882 = vcmp.eq.s32.totalorder %v219, %v859
        %vm883 = vcmp.eq.s32.totalorder %v218, %v862
        %vm884 = vcmp.eq.s32.totalorder %v219, %v862
        %vm885 = vcmp.eq.s32.totalorder %v218, %v865
        %vm886 = vcmp.eq.s32.totalorder %v219, %v865
        %vm887 = vcmp.eq.s32.totalorder %v218, %v868
        %vm888 = vcmp.eq.s32.totalorder %v219, %v868
        %vm889 = vcmp.eq.s32.totalorder %v218, %v871
        %vm890 = vcmp.eq.s32.totalorder %v219, %v871
        %vm891 = vcmp.eq.s32.totalorder %v218, %v874
        %vm892 = vcmp.eq.s32.totalorder %v219, %v874
        %vm893 = vcmp.eq.s32.totalorder %v218, %v877
        %vm894 = vcmp.eq.s32.totalorder %v219, %v877
        %vm895 = vcmp.eq.s32.totalorder %v218, %v880
        %vm896 = vcmp.eq.s32.totalorder %v219, %v880
        %v897 = vsel %vm881, 1, 0
        %v898 = vsel %vm882, 1, 0
        %v899 = vsel %vm883, 1, 0
        %v900 = vsel %vm884, 1, 0
        %v901 = vsel %vm885, 1, 0
        %v902 = vsel %vm886, 1, 0
        %v903 = vsel %vm887, 1, 0
        %v904 = vsel %vm888, 1, 0
        %v905 = vsel %vm889, 1, 0
        %v906 = vsel %vm890, 1, 0
        %v907 = vsel %vm891, 1, 0
        %v908 = vsel %vm892, 1, 0
        %v909 = vsel %vm893, 1, 0
        %v910 = vsel %vm894, 1, 0
        %v911 = vsel %vm895, 1, 0
        %v912 = vsel %vm896, 1, 0
        %v913 = vcvt.s32.f32 %v897
        %v914 = vcvt.s32.f32 %v898
        %v915 = vcvt.s32.f32 %v899
        %v916 = vcvt.s32.f32 %v900
        %v917 = vcvt.s32.f32 %v901
        %v918 = vcvt.s32.f32 %v902
        %v919 = vcvt.s32.f32 %v903
        %v920 = vcvt.s32.f32 %v904
        %v921 = vcvt.s32.f32 %v905
        %v922 = vcvt.s32.f32 %v906
        %v923 = vcvt.s32.f32 %v907
        %v924 = vcvt.s32.f32 %v908
        %v925 = vcvt.s32.f32 %v909
        %v926 = vcvt.s32.f32 %v910
        %v927 = vcvt.s32.f32 %v911
        %v928 = vcvt.s32.f32 %v912
        %s929 = scalar_lea.vmem [#allocation2], 768
        %v930 = vld [vmem:[%s929] sm:$0xff]
        %v931 = vld [vmem:[%s929 + $0x8] sm:$0xff]
        %v932 = vld [vmem:[%s929 + $0x10] sm:$0xff]
        %v933 = vld [vmem:[%s929 + $0x18] sm:$0xff]
        %v934 = vld [vmem:[%s929 + $0x20] sm:$0xff]
        %v935 = vld [vmem:[%s929 + $0x28] sm:$0xff]
        %v936 = vld [vmem:[%s929 + $0x30] sm:$0xff]
        %v937 = vld [vmem:[%s929 + $0x38] sm:$0xff]
        %v938 = vld [vmem:[%s929 + $0x40] sm:$0xff]
        %v939 = vld [vmem:[%s929 + $0x48] sm:$0xff]
        %v940 = vld [vmem:[%s929 + $0x50] sm:$0xff]
        %v941 = vld [vmem:[%s929 + $0x58] sm:$0xff]
        %v942 = vld [vmem:[%s929 + $0x60] sm:$0xff]
        %v943 = vld [vmem:[%s929 + $0x68] sm:$0xff]
        %v944 = vld [vmem:[%s929 + $0x70] sm:$0xff]
        %v945 = vld [vmem:[%s929 + $0x78] sm:$0xff]
        %v946 = vld [vmem:[%s929 + $0x80] sm:$0xff]
        %v947 = vld [vmem:[%s929 + $0x88] sm:$0xff]
        %v948 = vld [vmem:[%s929 + $0x90] sm:$0xff]
        %v949 = vld [vmem:[%s929 + $0x98] sm:$0xff]
        %v950 = vld [vmem:[%s929 + $0xa0] sm:$0xff]
        %v951 = vld [vmem:[%s929 + $0xa8] sm:$0xff]
        %v952 = vld [vmem:[%s929 + $0xb0] sm:$0xff]
        %v953 = vld [vmem:[%s929 + $0xb8] sm:$0xff]
        %v954 = vld [vmem:[%s929 + $0xc0] sm:$0xff]
        %v955 = vld [vmem:[%s929 + $0xc8] sm:$0xff]
        %v956 = vld [vmem:[%s929 + $0xd0] sm:$0xff]
        %v957 = vld [vmem:[%s929 + $0xd8] sm:$0xff]
        %v958 = vld [vmem:[%s929 + $0xe0] sm:$0xff]
        %v959 = vld [vmem:[%s929 + $0xe8] sm:$0xff]
        %v960 = vld [vmem:[%s929 + $0xf0] sm:$0xff]
        %v961 = vld [vmem:[%s929 + $0xf8] sm:$0xff]
        %962 = vmatprep.subr.mxu0 0.0
        %963 = vmatpush1.msra.mxu0 %v945
        %964 = vmatprep.subr.mxu0 0.0
        %965 = vmatpush1.msra.mxu0 %v944
        %966 = vmatprep.subr.mxu0 0.0
        %967 = vmatpush1.msra.mxu0 %v943
        %968 = vmatprep.subr.mxu0 0.0
        %969 = vmatpush1.msra.mxu0 %v942
        %970 = vmatprep.subr.mxu0 0.0
        %971 = vmatpush1.msra.mxu0 %v941
        %972 = vmatprep.subr.mxu0 0.0
        %973 = vmatpush1.msra.mxu0 %v940
        %974 = vmatprep.subr.mxu0 0.0
        %975 = vmatpush1.msra.mxu0 %v939
        %976 = vmatprep.subr.mxu0 0.0
        %977 = vmatpush1.msra.mxu0 %v938
        %978 = vmatprep.subr.mxu0 0.0
        %979 = vmatpush1.msra.mxu0 %v937
        %980 = vmatprep.subr.mxu0 0.0
        %981 = vmatpush1.msra.mxu0 %v936
        %982 = vmatprep.subr.mxu0 0.0
        %983 = vmatpush1.msra.mxu0 %v935
        %984 = vmatprep.subr.mxu0 0.0
        %985 = vmatpush1.msra.mxu0 %v934
        %986 = vmatprep.subr.mxu0 0.0
        %987 = vmatpush1.msra.mxu0 %v933
        %988 = vmatprep.subr.mxu0 0.0
        %989 = vmatpush1.msra.mxu0 %v932
        %990 = vmatprep.subr.mxu0 0.0
        %991 = vmatpush1.msra.mxu0 %v931
        %992 = vmatprep.subr.mxu0 0.0
        %993 = vmatpush1.msra.mxu0 %v930
        %994 = vmatprep.subr.mxu0 0.0
        %995 = vmatpush2.msra.mxu0 %v961
        %996 = vmatprep.subr.mxu0 0.0
        %997 = vmatpush2.msra.mxu0 %v960
        %998 = vmatprep.subr.mxu0 0.0
        %999 = vmatpush2.msra.mxu0 %v959
        %1000 = vmatprep.subr.mxu0 0.0
        %1001 = vmatpush2.msra.mxu0 %v958
        %1002 = vmatprep.subr.mxu0 0.0
        %1003 = vmatpush2.msra.mxu0 %v957
        %1004 = vmatprep.subr.mxu0 0.0
        %1005 = vmatpush2.msra.mxu0 %v956
        %1006 = vmatprep.subr.mxu0 0.0
        %1007 = vmatpush2.msra.mxu0 %v955
        %1008 = vmatprep.subr.mxu0 0.0
        %1009 = vmatpush2.msra.mxu0 %v954
        %1010 = vmatprep.subr.mxu0 0.0
        %1011 = vmatpush2.msra.mxu0 %v953
        %1012 = vmatprep.subr.mxu0 0.0
        %1013 = vmatpush2.msra.mxu0 %v952
        %1014 = vmatprep.subr.mxu0 0.0
        %1015 = vmatpush2.msra.mxu0 %v951
        %1016 = vmatprep.subr.mxu0 0.0
        %1017 = vmatpush2.msra.mxu0 %v950
        %1018 = vmatprep.subr.mxu0 0.0
        %1019 = vmatpush2.msra.mxu0 %v949
        %1020 = vmatprep.subr.mxu0 0.0
        %1021 = vmatpush2.msra.mxu0 %v948
        %1022 = vmatprep.subr.mxu0 0.0
        %1023 = vmatpush2.msra.mxu0 %v947
        %1024 = vmatprep.subr.mxu0 0.0
        %1025 = vmatpush2.msra.mxu0 %v946
        %1026 = vmatprep.mubr.f32.mxu0 %v914
        %1027 = vmatmul.mubr.f32.gmra.mxu0 %v913
        %v1028 = vpop.f32.mrf.mxu0
        %v1029 = vadd.f32 0.0, %v1028
        %v1030 = vpop.f32.mrf.mxu0
        %1031 = vmatprep.mubr.f32.mxu0 %v916
        %1032 = vmatmul.mubr.f32.gmra.mxu0 %v915
        %v1033 = vpop.f32.mrf.mxu0
        %v1034 = vadd.f32 0.0, %v1033
        %v1035 = vpop.f32.mrf.mxu0
        %1036 = vmatprep.mubr.f32.mxu0 %v918
        %1037 = vmatmul.mubr.f32.gmra.mxu0 %v917
        %v1038 = vpop.f32.mrf.mxu0
        %v1039 = vadd.f32 0.0, %v1038
        %v1040 = vpop.f32.mrf.mxu0
        %1041 = vmatprep.mubr.f32.mxu0 %v920
        %1042 = vmatmul.mubr.f32.gmra.mxu0 %v919
        %v1043 = vpop.f32.mrf.mxu0
        %v1044 = vadd.f32 0.0, %v1043
        %v1045 = vpop.f32.mrf.mxu0
        %1046 = vmatprep.mubr.f32.mxu0 %v922
        %1047 = vmatmul.mubr.f32.gmra.mxu0 %v921
        %v1048 = vpop.f32.mrf.mxu0
        %v1049 = vadd.f32 0.0, %v1048
        %v1050 = vpop.f32.mrf.mxu0
        %1051 = vmatprep.mubr.f32.mxu0 %v924
        %1052 = vmatmul.mubr.f32.gmra.mxu0 %v923
        %v1053 = vpop.f32.mrf.mxu0
        %v1054 = vadd.f32 0.0, %v1053
        %v1055 = vpop.f32.mrf.mxu0
        %1056 = vmatprep.mubr.f32.mxu0 %v926
        %1057 = vmatmul.mubr.f32.gmra.mxu0 %v925
        %v1058 = vpop.f32.mrf.mxu0
        %v1059 = vadd.f32 0.0, %v1058
        %v1060 = vpop.f32.mrf.mxu0
        %1061 = vmatprep.mubr.f32.mxu0 %v928
        %1062 = vmatmul.mubr.f32.gmra.mxu0 %v927
        %v1063 = vpop.f32.mrf.mxu0
        %v1064 = vadd.f32 0.0, %v1063
        %v1065 = vpop.f32.mrf.mxu0
        %1066 = vdwg.mxu0
        %v1067 = vadd.f32 %v849, %v1029
        %v1068 = vadd.f32 %v850, %v1034
        %v1069 = vadd.f32 %v851, %v1039
        %v1070 = vadd.f32 %v852, %v1044
        %v1071 = vadd.f32 %v853, %v1049
        %v1072 = vadd.f32 %v854, %v1054
        %v1073 = vadd.f32 %v855, %v1059
        %v1074 = vadd.f32 %v856, %v1064
        %v1075 = vld [vmem:[%s206] sm:$0xff]
        %v1076 = vld [vmem:[%s206 + $0x8] sm:$0xff]
        %v1077 = vld [vmem:[%s206 + $0x10] sm:$0xff]
        %v1078 = vld [vmem:[%s206 + $0x18] sm:$0xff]
        %v1079 = vld [vmem:[%s206 + $0x20] sm:$0xff]
        %v1080 = vld [vmem:[%s206 + $0x28] sm:$0xff]
        %v1081 = vld [vmem:[%s206 + $0x30] sm:$0xff]
        %v1082 = vld [vmem:[%s206 + $0x38] sm:$0xff]
        %v1083 = vadd.f32 %v1075, %v1067
        %v1084 = vadd.f32 %v1076, %v1068
        %v1085 = vadd.f32 %v1077, %v1069
        %v1086 = vadd.f32 %v1078, %v1070
        %v1087 = vadd.f32 %v1079, %v1071
        %v1088 = vadd.f32 %v1080, %v1072
        %v1089 = vadd.f32 %v1081, %v1073
        %v1090 = vadd.f32 %v1082, %v1074
        %1091 = vst [vmem:[%s195] sm:$0xff] %v1083
        %1092 = vst [vmem:[%s195 + $0x8] sm:$0xff] %v1084
        %1093 = vst [vmem:[%s195 + $0x10] sm:$0xff] %v1085
        %1094 = vst [vmem:[%s195 + $0x18] sm:$0xff] %v1086
        %1095 = vst [vmem:[%s195 + $0x20] sm:$0xff] %v1087
        %1096 = vst [vmem:[%s195 + $0x28] sm:$0xff] %v1088
        %1097 = vst [vmem:[%s195 + $0x30] sm:$0xff] %v1089
        %1098 = vst [vmem:[%s195 + $0x38] sm:$0xff] %v1090
        %s1099 = sand.u32 %s99, 1
        %s1100 = scalar_lea.sflag [#allocation4], %s1099
        %s1101 = sand.u32 %s99, 1
        %s1102 = smul.addr %s1101, 64
        %s1103 = scalar_lea.vmem [#allocation5], %s1102
        // Predicated region
        $region37: #{tpu_custom_call.1} parent=31 // pred_check
          %p1104 = pneg %p109
        $region38: #{tpu_custom_call.1} parent=31 // pred_check_branch
          %1106 = sbr.rel (%p1104) target = $region40
        $region39: #{tpu_custom_call.1} parent=31 // pred_region
          %s1107 = smul.u32 8, %s18
          %s1109 = ssub.s32 1024, 1024
          %1110 = vsyncadd %s1100, %s1109
          %s1111 = smul.addr %s1107, 128
          %s1112 = scalar_lea.hbm %s3, %s1111
          %s1113 = sshll.u32 %s1103, 4
          %s1114 = int_to_ptr.vmem [resolvable:$true] %s1113
          %1119 = dma.vmem_to_hbm [thread:$0]  %s1114, 1024, %s1112, %s1100, 128, 128, 8
        $region40: #{tpu_custom_call.1} parent=31 // pred_fallthru
          _
      $region32: #{tpu_custom_call.1} parent=5 // pred_fallthru
        _
      %p1120 = scmp.le.s32.totalorder 2, %s13
      // Predicated region
      $region41: #{tpu_custom_call.1} parent=5 // pred_check
        %p1121 = pneg %p1120
      $region42: #{tpu_custom_call.1} parent=5 // pred_check_branch
        %1123 = sbr.rel (%p1121) target = $region44
      $region43: #{tpu_custom_call.1} parent=5 // pred_region
        %s1124 = ssub.s32 %s13, 2
        // Predicated region
        $region45: #{tpu_custom_call.1} parent=43 // pred_check
          %p1125 = pneg %p115
        $region46: #{tpu_custom_call.1} parent=43 // pred_check_branch
          %1127 = sbr.rel (%p1125) target = $region48
        $region47: #{tpu_custom_call.1} parent=43 // pred_region
          %s1128 = sand.u32 %s100, 1
          %s1129 = scalar_lea.sflag [#allocation4], %s1128
          %s1130 = sand.u32 %s100, 1
          %s1131 = smul.addr %s1130, 64
          %s1132 = scalar_lea.vmem [#allocation5], %s1131
          %1133 = dma.done %s1129, 1024
        $region48: #{tpu_custom_call.1} parent=43 // pred_fallthru
          _
      $region44: #{tpu_custom_call.1} parent=5 // pred_fallthru
        _
    $region6: #{tpu_custom_call.1} parent=1 // loop_footer
      %s17 = sadd.s32 1, %s13
    $region7: #{tpu_custom_call.1} parent=1 // loop_footer_branch
      %12 = sbr.rel target = $region3
    $region8: #{tpu_custom_call.1} parent=1 // loop_exit
      _
    %1134 = vsyncpa [#allocation3], 1
    %s1135 = scalar_lea.sflag [#allocation3], 1
    %1136 = vsyncpa %s1135, 1
    %1137 = vsyncpa [#allocation4], 1
    %s1138 = scalar_lea.sflag [#allocation4], 1
    %1139 = vsyncpa %s1138, 1

</llo_original>
